<compile_context>
chip_gen: v6e
topology: v6e:2x2x1
jax: 0.10.0
libtpu: 0.0.40
codegen_flags: <defaults>
</compile_context>

<pallas_src>
import jax
import jax.numpy as jnp
from jax import lax
from jax.experimental import pallas as pl
from jax.experimental.pallas import tpu as pltpu


# ---------------------------------------------------------------------------
# Fast path: whole problem fits comfortably in one VMEM block (toy shapes).
# ---------------------------------------------------------------------------
def _myfunc_single_block_kernel(x_ref, c_ref, w_ref, o_ref):
    # y = (x + const) @ W^T in one fused body.  W stays in its native
    # (out_features, in_features) layout; contract the K (last) dim of both.
    xc = x_ref[...] + c_ref[...]                       # (M, K) VPU add
    o_ref[...] = lax.dot_general(
        xc,
        w_ref[...],
        dimension_numbers=(((1,), (1,)), ((), ())),
        preferred_element_type=jnp.float32,
    ).astype(o_ref.dtype)


# ---------------------------------------------------------------------------
# General path: M/N/K tiled matmul.  const folded in as an in-kernel VPU add;
# W pre-transposed once in the wrapper -> canonical (tk, tn) RHS for the MXU.
# ---------------------------------------------------------------------------
def _myfunc_tiled_kernel_direct(x_ref, c_ref, wt_ref, o_ref):
    # f32 output: accumulate straight into the resident output tile.
    @pl.when(pl.program_id(2) == 0)
    def _():
        o_ref[...] = jnp.zeros_like(o_ref)

    o_ref[...] += jnp.dot(
        x_ref[...] + c_ref[...], wt_ref[...], preferred_element_type=jnp.float32
    )


def _myfunc_tiled_kernel_acc(x_ref, c_ref, wt_ref, o_ref, acc_ref):
    # Non-f32 output: f32 VMEM accumulator, cast once in the epilogue.
    k = pl.program_id(2)

    @pl.when(k == 0)
    def _():
        acc_ref[...] = jnp.zeros_like(acc_ref)

    acc_ref[...] += jnp.dot(
        x_ref[...] + c_ref[...], wt_ref[...], preferred_element_type=jnp.float32
    )

    @pl.when(k == pl.num_programs(2) - 1)
    def _():
        o_ref[...] = acc_ref[...].astype(o_ref.dtype)


def _round_up(x, m):
    return (x + m - 1) // m * m


def _pad2d(a, rows, cols):
    pr, pc = rows - a.shape[0], cols - a.shape[1]
    if pr == 0 and pc == 0:
        return a
    return jnp.pad(a, ((0, pr), (0, pc)))


def myfunc_forward(
    x,
    const,
    weight,
    *,
    tm_cap=512,
    tn_cap=512,
    tk_cap=1024,
    single_block_bytes=2 << 20,
):
    """Computes F.linear(x + const, weight) == (x + const) @ weight.T."""
    M, K = x.shape
    N = weight.shape[0]
    out_dtype = x.dtype
    in_itemsize = jnp.dtype(x.dtype).itemsize
    out_itemsize = jnp.dtype(out_dtype).itemsize
    const2d = const.reshape(1, K).astype(x.dtype)

    # ---- single-block fast path (covers the actual B=8, K=32, N=16 case) ----
    footprint = in_itemsize * (M * K + N * K + K) + out_itemsize * M * N
    if footprint <= single_block_bytes:
        return pl.pallas_call(
            _myfunc_single_block_kernel,
            out_shape=jax.ShapeDtypeStruct((M, N), out_dtype),
        )(x, const2d, weight)

    # ---- general tiled path --------------------------------------------------
    # Sublane multiple for the M axis depends on dtype packing (f32: 8, bf16: 16).
    sub = max(8, 32 // in_itemsize)

    M_pad = _round_up(M, sub)
    tm = min(tm_cap, M_pad)
    M_pad = _round_up(M_pad, tm)

    K_pad = _round_up(K, 128)
    tk = min(tk_cap, K_pad)
    K_pad = _round_up(K_pad, tk)

    N_pad = _round_up(N, 128)
    tn = min(tn_cap, N_pad)
    N_pad = _round_up(N_pad, tn)

    # One-time wrapper-side transpose of W -> (K, N); K stays zero-padded
    # (load-bearing: padded columns of x + padded const are zero).
    x_p = _pad2d(x, M_pad, K_pad)
    wt_p = _pad2d(weight.T, K_pad, N_pad)
    c_p = _pad2d(const2d, 1, K_pad)

    grid = (M_pad // tm, N_pad // tn, K_pad // tk)

    use_direct = out_dtype == jnp.float32
    kernel = _myfunc_tiled_kernel_direct if use_direct else _myfunc_tiled_kernel_acc
    scratch_shapes = [] if use_direct else [pltpu.VMEM((tm, tn), jnp.float32)]

    # VMEM budget: double-buffered inputs/outputs (+ acc if used), with headroom.
    vmem_need = 2 * (
        tm * tk * in_itemsize + tk * tn * in_itemsize + tk * in_itemsize
        + tm * tn * out_itemsize
    ) + (0 if use_direct else tm * tn * 4)
    vmem_limit = min(48 << 20, max(32 << 20, int(vmem_need * 3 // 2)))

    # x is re-streamed once per N tile, W once per M tile.
    reread_x = N_pad // tn
    reread_w = M_pad // tm
    bytes_accessed = (
        in_itemsize * (M_pad * K_pad * reread_x + K_pad * N_pad * reread_w)
        + out_itemsize * M_pad * N_pad
    )

    out = pl.pallas_call(
        kernel,
        out_shape=jax.ShapeDtypeStruct((M_pad, N_pad), out_dtype),
        grid_spec=pltpu.PrefetchScalarGridSpec(
            num_scalar_prefetch=0,
            grid=grid,
            in_specs=[
                pl.BlockSpec((tm, tk), lambda i, j, k: (i, k)),   # x tile
                pl.BlockSpec((1, tk), lambda i, j, k: (0, k)),    # const tile
                pl.BlockSpec((tk, tn), lambda i, j, k: (k, j)),   # W^T tile (K, N)
            ],
            out_specs=pl.BlockSpec((tm, tn), lambda i, j, k: (i, j)),
            scratch_shapes=scratch_shapes,
        ),
        compiler_params=pltpu.CompilerParams(
            dimension_semantics=("parallel", "parallel", "arbitrary"),
            vmem_limit_bytes=vmem_limit,
        ),
        cost_estimate=pl.CostEstimate(
            flops=2 * M_pad * N_pad * K_pad,
            transcendentals=0,
            bytes_accessed=bytes_accessed,
        ),
    )(x_p, c_p, wt_p)

    if M_pad == M and N_pad == N:
        return out
    return out[:M, :N]


if __name__ == "__main__":
    # Shapes consistent with the module: batch=8, in_features=32, out_features=16
    B, in_features, out_features = 8, 32, 16

    key = jax.random.PRNGKey(0)
    kx, kw = jax.random.split(key)

    x = jax.random.normal(kx, (B, in_features), dtype=jnp.float32)
    # weight.data.uniform_(-0.1, 0.1)
    weight = jax.random.uniform(
        kw, (out_features, in_features), dtype=jnp.float32, minval=-0.1, maxval=0.1
    )
    # register_buffer('const', torch.full((in_features,), 1.0))
    const = jnp.full((in_features,), 1.0, dtype=jnp.float32)

    # Fast (single-block) path -- the actual module-sized problem.
    y = myfunc_forward(x, const, weight)
    jax.block_until_ready(y)
    y_ref = (x + const[None, :]) @ weight.T
    assert y.shape == (B, out_features)
    assert jnp.allclose(y, y_ref, atol=1e-5, rtol=1e-5)

    # Also exercise the general tiled path (small tiles -> grid (1, 2, 2)).
    M2, K2, N2 = 128, 256, 256
    x2 = jax.random.normal(jax.random.PRNGKey(1), (M2, K2), dtype=jnp.float32)
    w2 = jax.random.uniform(
        jax.random.PRNGKey(2), (N2, K2), dtype=jnp.float32, minval=-0.1, maxval=0.1
    )
    c2 = jnp.full((K2,), 1.0, dtype=jnp.float32)
    y2 = myfunc_forward(
        x2, c2, w2, tm_cap=128, tn_cap=128, tk_cap=128, single_block_bytes=0
    )
    jax.block_until_ready(y2)
    y2_ref = (x2 + c2[None, :]) @ w2.T
    assert jnp.allclose(y2, y2_ref, atol=1e-4, rtol=1e-4)

    print("KERNEL_OK")
</pallas_src>

<mosaic_0001>
module attributes {stable_mosaic.version = 11 : i64} {
  func.func @_myfunc_single_block_kernel(%arg0: memref<8x32xf32, #tpu.memory_space<vmem>>, %arg1: memref<1x32xf32, #tpu.memory_space<vmem>>, %arg2: memref<16x32xf32, #tpu.memory_space<vmem>>, %arg3: memref<8x16xf32, #tpu.memory_space<vmem>>) attributes {dimension_semantics = [], scalar_prefetch = 0 : i64, scratch_operands = 0 : i64, tpu.core_type = #tpu.core_type<tc>} {
    %c0 = arith.constant 0 : index
    %c0_0 = arith.constant 0 : index
    %0 = vector.load %arg0[%c0, %c0_0] : memref<8x32xf32, #tpu.memory_space<vmem>>, vector<8x32xf32>
    %c0_1 = arith.constant 0 : index
    %c0_2 = arith.constant 0 : index
    %1 = vector.load %arg1[%c0_1, %c0_2] : memref<1x32xf32, #tpu.memory_space<vmem>>, vector<1x32xf32>
    %2 = vector.broadcast %1 : vector<1x32xf32> to vector<8x32xf32>
    %3 = arith.addf %0, %2 : vector<8x32xf32>
    %c0_3 = arith.constant 0 : index
    %c0_4 = arith.constant 0 : index
    %4 = vector.load %arg2[%c0_3, %c0_4] : memref<16x32xf32, #tpu.memory_space<vmem>>, vector<16x32xf32>
    %cst = arith.constant dense<0.000000e+00> : vector<8x16xf32>
    %5 = tpu.matmul %3, %4, %cst {dimension_numbers = #tpu.dot_dimension_numbers<[1], [1], [0], [0], [0, 0, 1, 0], [], []>} : vector<8x32xf32>, vector<16x32xf32>, vector<8x16xf32> -> vector<8x16xf32>
    %c0_5 = arith.constant 0 : index
    %c0_6 = arith.constant 0 : index
    %6 = vector.load %arg3[%c0_5, %c0_6] : memref<8x16xf32, #tpu.memory_space<vmem>>, vector<8x16xf32>
    tpu.vector_store %arg3[%c0_5, %c0_6], %5 {strides = array<i32>} : memref<8x16xf32, #tpu.memory_space<vmem>>, vector<8x16xf32>,
    return
  }
}

</mosaic_0001>

<llo_original>
// kernel: tpu_custom_call.1
$region0: #{tpu_custom_call.1}
  #allocation0 [shape = 'u32[]', space=smem, size = 0x4, offset = 0x4, fixed_abs, tag = 'smem constant byte address 0x4 - core index']
  #allocation1 [shape = 'u32[144,128]{1,0:T(1,128)}', space=vmem, size = 0x12000, scoped, tag = 'internal scratch']
  %s0 = inlined_call_operand.hbm [shape: f32[8,32], index: 0, kind: input, shape index: {}]
  %s1 = inlined_call_operand.vmem [shape: f32[1,32], index: 1, kind: input, shape index: {}]
  %s2 = inlined_call_operand.hbm [shape: f32[16,32], index: 2, kind: input, shape index: {}]
  %s3 = inlined_call_operand.hbm [shape: f32[8,16], index: 3, kind: output, shape index: {}]
  %s4 = sld [smem:[#allocation0]]
  $region30: #{tpu_custom_call.1} parent=0
    _
  %s6 = ssub.s32 1, %s4
  %s7 = scalar_select 0, %s6, %s4
  $region1: #{tpu_custom_call.1} parent=0
    #allocation2 [shape = 'u8[4096]{0}', space=vmem, size = 0x1000, scoped, tag = 'input window, operand 0, single buffered']
    #allocation3 [shape = 's32[1]{0}', space=sflag, size = 0x4, scoped, tag = 'scoped memory for tpu_custom_call.1']
    #allocation4 [shape = 's32[1]{0}', space=sflag, size = 0x4, scoped, tag = 'scoped memory for tpu_custom_call.1']
    #allocation5 [shape = 'u8[8192]{0}', space=vmem, size = 0x2000, scoped, tag = 'input window, operand 2, single buffered']
    #allocation6 [shape = 's32[1]{0}', space=sflag, size = 0x4, scoped, tag = 'scoped memory for tpu_custom_call.1']
    #allocation7 [shape = 'u8[4096]{0}', space=vmem, size = 0x1000, scoped, tag = 'output window, operand 0, single buffered']
    %8 = vsyncpa [#allocation3], 0
    %9 = vsyncpa [#allocation6], 0
    %10 = vsyncpa [#allocation4], 0
    // Predicated region
    $region2: #{tpu_custom_call.1} parent=1 // pred_check
      _
    $region3: #{tpu_custom_call.1} parent=1 // pred_check_branch
      %12 = sbr.rel (0) target = $region5
    $region4: #{tpu_custom_call.1} parent=1 // pred_region
      %s14 = ssub.s32 128, 128
      %15 = vsyncadd [#allocation3], %s14
      %s17 = sshll.u32 [#allocation2], 4
      %s18 = int_to_ptr.vmem [resolvable:$true] %s17
      %20 = dma.hbm_to_vmem [thread:$0]  %s0, 128, %s18, [#allocation3]
    $region5: #{tpu_custom_call.1} parent=1 // pred_fallthru
      _
    // Predicated region
    $region6: #{tpu_custom_call.1} parent=1 // pred_check
      _
    $region7: #{tpu_custom_call.1} parent=1 // pred_check_branch
      %22 = sbr.rel (0) target = $region9
    $region8: #{tpu_custom_call.1} parent=1 // pred_region
      _
    $region9: #{tpu_custom_call.1} parent=1 // pred_fallthru
      _
    // Predicated region
    $region10: #{tpu_custom_call.1} parent=1 // pred_check
      _
    $region11: #{tpu_custom_call.1} parent=1 // pred_check_branch
      %24 = sbr.rel (0) target = $region13
    $region12: #{tpu_custom_call.1} parent=1 // pred_region
      %s26 = ssub.s32 256, 256
      %27 = vsyncadd [#allocation6], %s26
      %s28 = sshll.u32 [#allocation5], 4
      %s29 = int_to_ptr.vmem [resolvable:$true] %s28
      %34 = dma.hbm_to_vmem [thread:$0]  %s2, 256, %s29, [#allocation6], 128, 128, 8
    $region13: #{tpu_custom_call.1} parent=1 // pred_fallthru
      _
    // Predicated region
    $region14: #{tpu_custom_call.1} parent=1 // pred_check
      _
    $region15: #{tpu_custom_call.1} parent=1 // pred_check_branch
      %36 = sbr.rel (0) target = $region17
    $region16: #{tpu_custom_call.1} parent=1 // pred_region
      %37 = dma.done [#allocation3], 128
    $region17: #{tpu_custom_call.1} parent=1 // pred_fallthru
      _
    // Predicated region
    $region18: #{tpu_custom_call.1} parent=1 // pred_check
      _
    $region19: #{tpu_custom_call.1} parent=1 // pred_check_branch
      %39 = sbr.rel (0) target = $region21
    $region20: #{tpu_custom_call.1} parent=1 // pred_region
      %40 = dma.done [#allocation6], 256
    $region21: #{tpu_custom_call.1} parent=1 // pred_fallthru
      _
    %v41 = vld [vmem:[#allocation2] sm:$0xff]
    %v42 = vld [vmem:[%s1] sm:$0x1]
    %v44 = vlaneseq
    %v45 = vshrl.u32 %v44, 7
    %v46 = vsub.s32 0, %v45
    %v47 = vrot.slane %v42, %v46
    %v49 = vadd.f32 %v41, %v47
    %v50 = vld [vmem:[#allocation5] sm:$0xff]
    %v51 = vld [vmem:[#allocation5 + $0x8] sm:$0xff]
    %vm52 = vcmask 261120
    %v54 = vsel %vm52, %v49, 0
    %v57 = vsel %vm52, %v50, 0
    %v60 = vsel %vm52, %v51, 0
    %62 = vmatprep.subr.mxu0 0.0
    %63 = vmatpush1.xpose.msra.mxu0 0.0
    %64 = vmatprep.subr.mxu0 0.0
    %65 = vmatpush1.xpose.msra.mxu0 0.0
    %66 = vmatprep.subr.mxu0 0.0
    %67 = vmatpush1.xpose.msra.mxu0 0.0
    %68 = vmatprep.subr.mxu0 0.0
    %69 = vmatpush1.xpose.msra.mxu0 0.0
    %70 = vmatprep.subr.mxu0 0.0
    %71 = vmatpush1.xpose.msra.mxu0 0.0
    %72 = vmatprep.subr.mxu0 0.0
    %73 = vmatpush1.xpose.msra.mxu0 0.0
    %74 = vmatprep.subr.mxu0 0.0
    %75 = vmatpush1.xpose.msra.mxu0 0.0
    %76 = vmatprep.subr.mxu0 0.0
    %77 = vmatpush1.xpose.msra.mxu0 0.0
    %78 = vmatprep.subr.mxu0 0.0
    %79 = vmatpush1.xpose.msra.mxu0 0.0
    %80 = vmatprep.subr.mxu0 0.0
    %81 = vmatpush1.xpose.msra.mxu0 0.0
    %82 = vmatprep.subr.mxu0 0.0
    %83 = vmatpush1.xpose.msra.mxu0 0.0
    %84 = vmatprep.subr.mxu0 0.0
    %85 = vmatpush1.xpose.msra.mxu0 0.0
    %86 = vmatprep.subr.mxu0 0.0
    %87 = vmatpush1.xpose.msra.mxu0 0.0
    %88 = vmatprep.subr.mxu0 0.0
    %89 = vmatpush1.xpose.msra.mxu0 0.0
    %90 = vmatprep.subr.mxu0 0.0
    %91 = vmatpush1.xpose.msra.mxu0 %v60
    %92 = vmatprep.subr.mxu0 0.0
    %93 = vmatpush1.xpose.msra.mxu0 %v57
    %94 = vmatprep.subr.mxu0 0.0
    %95 = vmatpush2.xpose.msra.mxu0 0.0
    %96 = vmatprep.subr.mxu0 0.0
    %97 = vmatpush2.xpose.msra.mxu0 0.0
    %98 = vmatprep.subr.mxu0 0.0
    %99 = vmatpush2.xpose.msra.mxu0 0.0
    %100 = vmatprep.subr.mxu0 0.0
    %101 = vmatpush2.xpose.msra.mxu0 0.0
    %102 = vmatprep.subr.mxu0 0.0
    %103 = vmatpush2.xpose.msra.mxu0 0.0
    %104 = vmatprep.subr.mxu0 0.0
    %105 = vmatpush2.xpose.msra.mxu0 0.0
    %106 = vmatprep.subr.mxu0 0.0
    %107 = vmatpush2.xpose.msra.mxu0 0.0
    %108 = vmatprep.subr.mxu0 0.0
    %109 = vmatpush2.xpose.msra.mxu0 0.0
    %110 = vmatprep.subr.mxu0 0.0
    %111 = vmatpush2.xpose.msra.mxu0 0.0
    %112 = vmatprep.subr.mxu0 0.0
    %113 = vmatpush2.xpose.msra.mxu0 0.0
    %114 = vmatprep.subr.mxu0 0.0
    %115 = vmatpush2.xpose.msra.mxu0 0.0
    %116 = vmatprep.subr.mxu0 0.0
    %117 = vmatpush2.xpose.msra.mxu0 0.0
    %118 = vmatprep.subr.mxu0 0.0
    %119 = vmatpush2.xpose.msra.mxu0 0.0
    %120 = vmatprep.subr.mxu0 0.0
    %121 = vmatpush2.xpose.msra.mxu0 0.0
    %122 = vmatprep.subr.mxu0 0.0
    %123 = vmatpush2.xpose.msra.mxu0 0.0
    %124 = vmatprep.subr.mxu0 0.0
    %125 = vmatpush2.xpose.msra.mxu0 0.0
    %126 = vmatprep.mubr.f32.mxu0 0.0
    %127 = vmatmul.mubr.f32.gmra.mxu0 %v54
    %v128 = vpop.f32.mrf.mxu0
    %v129 = vadd.f32 0.0, %v128
    %v130 = vpop.f32.mrf.mxu0
    %131 = vdwg.mxu0
    %vm132 = vcmask 130048
    %133 = vst.msk [vmem:[#allocation7] sm:$0xff] %vm132, %v129
    // Predicated region
    $region22: #{tpu_custom_call.1} parent=1 // pred_check
      _
    $region23: #{tpu_custom_call.1} parent=1 // pred_check_branch
      %135 = sbr.rel (0) target = $region25
    $region24: #{tpu_custom_call.1} parent=1 // pred_region
      %s137 = ssub.s32 128, 128
      %138 = vsyncadd [#allocation4], %s137
      %s140 = sshll.u32 [#allocation7], 4
      %s141 = int_to_ptr.vmem [resolvable:$true] %s140
      %143 = dma.vmem_to_hbm [thread:$0]  %s141, 128, %s3, [#allocation4]
    $region25: #{tpu_custom_call.1} parent=1 // pred_fallthru
      _
    // Predicated region
    $region26: #{tpu_custom_call.1} parent=1 // pred_check
      _
    $region27: #{tpu_custom_call.1} parent=1 // pred_check_branch
      %145 = sbr.rel (0) target = $region29
    $region28: #{tpu_custom_call.1} parent=1 // pred_region
      %146 = dma.done [#allocation4], 128
    $region29: #{tpu_custom_call.1} parent=1 // pred_fallthru
      _
    %147 = vsyncpa [#allocation3], 1
    %148 = vsyncpa [#allocation6], 1
    %149 = vsyncpa [#allocation4], 1

</llo_original>
